<compile_context>
chip_gen: v7x
topology: tpu7x:2x2x1
jax: 0.10.0
libtpu: 0.0.40
codegen_flags: <defaults>
</compile_context>

<pallas_src>
import functools

import jax
import jax.numpy as jnp
from jax.experimental import pallas as pl
from jax.experimental.pallas import tpu as pltpu


def _round_up(x, m):
    return ((x + m - 1) // m) * m


def _merge_kernel(z_ref, wh_ref, bh_ref, wd_ref, bd_ref, out_ref):
    """Fused forward nn_phy(nn_per(z)) on one batch tile (batch in lanes).

    z_ref : (D_in, TB)      input tile (features x batch)
    wh_ref: (2, H, D_in)    stacked transposed first-layer weights (per, phy)
    bh_ref: (2, H, 1)       stacked first-layer biases
    wd_ref: (2, D_out, H)   stacked transposed second-layer weights (per, phy)
    bd_ref: (2, D_out, 1)   stacked second-layer biases
    out_ref: (D_out, TB)
    """
    x = z_ref[...]                                                      # (D_in, TB)

    # ---- nn_per: Linear -> tanh -> Linear ----
    h1 = jnp.tanh(
        jnp.dot(wh_ref[0], x, preferred_element_type=jnp.float32) + bh_ref[0]
    )                                                                   # (H, TB)
    c1 = jnp.dot(wd_ref[0], h1, preferred_element_type=jnp.float32) + bd_ref[0]

    # ---- nn_phy: Linear -> tanh -> Linear ----
    h2 = jnp.tanh(
        jnp.dot(wh_ref[1], c1, preferred_element_type=jnp.float32) + bh_ref[1]
    )                                                                   # (H, TB)
    out = jnp.dot(wd_ref[1], h2, preferred_element_type=jnp.float32) + bd_ref[1]

    out_ref[...] = out.astype(out_ref.dtype)


@functools.partial(jax.jit, static_argnames=("tile_b",))
def neural_ode_merge_forward(z, params, *, tile_b=512):
    """comp2 = nn_phy(nn_per(z)) via a single fused Pallas kernel.

    z: (B, D_in) float32; any B (padded internally to a multiple of the batch tile).
    params: dict with w1..w4 stored as (in, out) and b1..b4 stored as (1, out).
    tile_b: batch rows per grid step; must be a multiple of 128.
    """
    assert tile_b % 128 == 0, "tile_b must be a multiple of 128"
    B, D_in = z.shape
    w1, b1, w2, b2 = params["w1"], params["b1"], params["w2"], params["b2"]
    w3, b3, w4, b4 = params["w3"], params["b3"], params["w4"], params["b4"]
    H = w1.shape[1]
    D_out = w4.shape[1]

    # Packing the two sub-nets into stacked slabs requires matching layer shapes
    # (true for the canonical 4 -> 32 -> 4 setup used for both nn_per and nn_phy).
    assert w3.shape == w1.shape and w4.shape == w2.shape
    assert b3.shape == b1.shape and b4.shape == b2.shape

    # Transposed + stacked weight slabs; the kernel computes W^T @ x (batch in lanes).
    wh = jnp.stack([w1.T, w3.T])                                  # (2, H, D_in)
    bh = jnp.stack([b1.reshape(H, 1), b3.reshape(H, 1)])          # (2, H, 1)
    wd = jnp.stack([w2.T, w4.T])                                  # (2, D_out, H)
    bd = jnp.stack([b2.reshape(D_out, 1), b4.reshape(D_out, 1)])  # (2, D_out, 1)

    # Batch-in-lanes: carry z transposed; pad batch to a multiple of the tile.
    tb = min(tile_b, _round_up(B, 128))
    b_pad = _round_up(B, tb)
    zt = z.T                                                      # (D_in, B)
    if b_pad != B:
        zt = jnp.pad(zt, ((0, 0), (0, b_pad - B)))
    grid = (b_pad // tb,)

    const3 = lambda i: (0, 0, 0)  # weights: same whole-array block every step

    out_t = pl.pallas_call(
        _merge_kernel,
        out_shape=jax.ShapeDtypeStruct((D_out, b_pad), z.dtype),
        grid_spec=pl.GridSpec(
            grid=grid,
            in_specs=[
                pl.BlockSpec((D_in, tb), lambda i: (0, i)),       # streamed z tile
                pl.BlockSpec(wh.shape, const3),
                pl.BlockSpec(bh.shape, const3),
                pl.BlockSpec(wd.shape, const3),
                pl.BlockSpec(bd.shape, const3),
            ],
            out_specs=pl.BlockSpec((D_out, tb), lambda i: (0, i)),
        ),
        compiler_params=pltpu.CompilerParams(
            # Batch tiles are independent -> v7x can shard them across its 2 TCs.
            dimension_semantics=("parallel",),
        ),
    )(zt, wh, bh, wd, bd)

    return out_t[:, :B].T                                         # (B, D_out)


def init_params(key, d_in=4, hidden=32, d_out=4):
    """Deterministic synthetic parameters (nn.Linear shapes, stored transposed
    as (in, out) for the x @ W convention)."""
    ks = jax.random.split(key, 8)

    def lin(kw, kb, fan_in, fan_out):
        bound = 1.0 / jnp.sqrt(jnp.float32(fan_in))
        w = jax.random.uniform(kw, (fan_in, fan_out), jnp.float32, -bound, bound)
        b = jax.random.uniform(kb, (1, fan_out), jnp.float32, -bound, bound)
        return w, b

    w1, b1 = lin(ks[0], ks[1], d_in, hidden)    # nn_per layer 1
    w2, b2 = lin(ks[2], ks[3], hidden, d_in)    # nn_per layer 2
    w3, b3 = lin(ks[4], ks[5], d_in, hidden)    # nn_phy layer 1
    w4, b4 = lin(ks[6], ks[7], hidden, d_out)   # nn_phy layer 2

    return {
        "a": jnp.float32(-0.2),  # present in module, unused in forward
        "b": jnp.float32(-0.3),  # present in module, unused in forward
        "w1": w1, "b1": b1, "w2": w2, "b2": b2,
        "w3": w3, "b3": b3, "w4": w4, "b4": b4,
    }


def _reference_forward(z, p):
    h1 = jnp.tanh(z @ p["w1"] + p["b1"])
    c1 = h1 @ p["w2"] + p["b2"]
    h2 = jnp.tanh(c1 @ p["w3"] + p["b3"])
    return h2 @ p["w4"] + p["b4"]


if __name__ == "__main__":
    key = jax.random.PRNGKey(0)
    k_params, k_z1, k_z2 = jax.random.split(key, 3)

    B, D_IN, HIDDEN, D_OUT = 16, 4, 32, 4
    params = init_params(k_params, d_in=D_IN, hidden=HIDDEN, d_out=D_OUT)

    # Small batch (padded internally to one 128-lane tile).
    z = jax.random.normal(k_z1, (B, D_IN), dtype=jnp.float32)
    out = jax.block_until_ready(neural_ode_merge_forward(z, params))
    ref = _reference_forward(z, params)
    assert out.shape == (B, D_OUT)
    assert jnp.allclose(out, ref, atol=1e-4, rtol=1e-4), "mismatch (small batch)"

    # Ragged batch exercising >1 grid step plus the padding path.
    z2 = jax.random.normal(k_z2, (300, D_IN), dtype=jnp.float32)
    out2 = jax.block_until_ready(neural_ode_merge_forward(z2, params, tile_b=256))
    ref2 = _reference_forward(z2, params)
    assert out2.shape == (300, D_OUT)
    assert jnp.allclose(out2, ref2, atol=1e-4, rtol=1e-4), "mismatch (ragged batch)"

    print("KERNEL_OK")
</pallas_src>

<mosaic_0001>
module attributes {stable_mosaic.version = 11 : i64} {
  func.func @_merge_kernel(%arg0: i32, %arg1: memref<4x128xf32, #tpu.memory_space<vmem>>, %arg2: memref<2x32x4xf32, #tpu.memory_space<vmem>>, %arg3: memref<2x32x1xf32, #tpu.memory_space<vmem>>, %arg4: memref<2x4x32xf32, #tpu.memory_space<vmem>>, %arg5: memref<2x4x1xf32, #tpu.memory_space<vmem>>, %arg6: memref<4x128xf32, #tpu.memory_space<vmem>>) attributes {dimension_semantics = [#tpu.dimension_semantics<parallel>], iteration_bounds = array<i64: 1>, scalar_prefetch = 0 : i64, scratch_operands = 0 : i64, tpu.core_type = #tpu.core_type<tc>, window_params = [{transform_indices = @transform_0, window_bounds = array<i64: 4, 128>}, {pipeline_mode = #tpu.pipeline_mode<synchronous>, transform_indices = @transform_1, window_bounds = array<i64: 2, 32, 4>}, {pipeline_mode = #tpu.pipeline_mode<synchronous>, transform_indices = @transform_2, window_bounds = array<i64: 2, 32, 1>}, {pipeline_mode = #tpu.pipeline_mode<synchronous>, transform_indices = @transform_3, window_bounds = array<i64: 2, 4, 32>}, {pipeline_mode = #tpu.pipeline_mode<synchronous>, transform_indices = @transform_4, window_bounds = array<i64: 2, 4, 1>}, {transform_indices = @transform_5, window_bounds = array<i64: 4, 128>}]} {
    %c0 = arith.constant 0 : index
    %c0_0 = arith.constant 0 : index
    %0 = vector.load %arg1[%c0, %c0_0] : memref<4x128xf32, #tpu.memory_space<vmem>>, vector<4x128xf32>
    %c0_1 = arith.constant 0 : index
    %c0_2 = arith.constant 0 : index
    %c0_3 = arith.constant 0 : index
    %1 = vector.load %arg2[%c0_1, %c0_2, %c0_3] : memref<2x32x4xf32, #tpu.memory_space<vmem>>, vector<1x32x4xf32>
    %2 = vector.shape_cast %1 : vector<1x32x4xf32> to vector<32x4xf32>
    %cst = arith.constant dense<0.000000e+00> : vector<32x128xf32>
    %3 = tpu.matmul %2, %0, %cst {dimension_numbers = #tpu.dot_dimension_numbers<[1], [0], [0], [1], [0, 0, 1, 1], [], []>} : vector<32x4xf32>, vector<4x128xf32>, vector<32x128xf32> -> vector<32x128xf32>
    %c0_4 = arith.constant 0 : index
    %c0_5 = arith.constant 0 : index
    %c0_6 = arith.constant 0 : index
    %4 = vector.load %arg3[%c0_4, %c0_5, %c0_6] : memref<2x32x1xf32, #tpu.memory_space<vmem>>, vector<1x32x1xf32>
    %5 = vector.shape_cast %4 : vector<1x32x1xf32> to vector<32x1xf32>
    %6 = vector.broadcast %5 : vector<32x1xf32> to vector<32x128xf32>
    %7 = arith.addf %3, %6 : vector<32x128xf32>
    %8 = math.tanh %7 : vector<32x128xf32>
    %c0_7 = arith.constant 0 : index
    %c0_8 = arith.constant 0 : index
    %c0_9 = arith.constant 0 : index
    %9 = vector.load %arg4[%c0_7, %c0_8, %c0_9] : memref<2x4x32xf32, #tpu.memory_space<vmem>>, vector<1x4x32xf32>
    %10 = vector.shape_cast %9 : vector<1x4x32xf32> to vector<4x32xf32>
    %cst_10 = arith.constant dense<0.000000e+00> : vector<4x128xf32>
    %11 = tpu.matmul %10, %8, %cst_10 {dimension_numbers = #tpu.dot_dimension_numbers<[1], [0], [0], [1], [0, 0, 1, 1], [], []>} : vector<4x32xf32>, vector<32x128xf32>, vector<4x128xf32> -> vector<4x128xf32>
    %c0_11 = arith.constant 0 : index
    %c0_12 = arith.constant 0 : index
    %c0_13 = arith.constant 0 : index
    %12 = vector.load %arg5[%c0_11, %c0_12, %c0_13] : memref<2x4x1xf32, #tpu.memory_space<vmem>>, vector<1x4x1xf32>
    %13 = vector.shape_cast %12 : vector<1x4x1xf32> to vector<4x1xf32>
    %14 = vector.broadcast %13 : vector<4x1xf32> to vector<4x128xf32>
    %15 = arith.addf %11, %14 : vector<4x128xf32>
    %c1 = arith.constant 1 : index
    %c0_14 = arith.constant 0 : index
    %c0_15 = arith.constant 0 : index
    %16 = vector.load %arg2[%c1, %c0_14, %c0_15] : memref<2x32x4xf32, #tpu.memory_space<vmem>>, vector<1x32x4xf32>
    %17 = vector.shape_cast %16 : vector<1x32x4xf32> to vector<32x4xf32>
    %cst_16 = arith.constant dense<0.000000e+00> : vector<32x128xf32>
    %18 = tpu.matmul %17, %15, %cst_16 {dimension_numbers = #tpu.dot_dimension_numbers<[1], [0], [0], [1], [0, 0, 1, 1], [], []>} : vector<32x4xf32>, vector<4x128xf32>, vector<32x128xf32> -> vector<32x128xf32>
    %c1_17 = arith.constant 1 : index
    %c0_18 = arith.constant 0 : index
    %c0_19 = arith.constant 0 : index
    %19 = vector.load %arg3[%c1_17, %c0_18, %c0_19] : memref<2x32x1xf32, #tpu.memory_space<vmem>>, vector<1x32x1xf32>
    %20 = vector.shape_cast %19 : vector<1x32x1xf32> to vector<32x1xf32>
    %21 = vector.broadcast %20 : vector<32x1xf32> to vector<32x128xf32>
    %22 = arith.addf %18, %21 : vector<32x128xf32>
    %23 = math.tanh %22 : vector<32x128xf32>
    %c1_20 = arith.constant 1 : index
    %c0_21 = arith.constant 0 : index
    %c0_22 = arith.constant 0 : index
    %24 = vector.load %arg4[%c1_20, %c0_21, %c0_22] : memref<2x4x32xf32, #tpu.memory_space<vmem>>, vector<1x4x32xf32>
    %25 = vector.shape_cast %24 : vector<1x4x32xf32> to vector<4x32xf32>
    %cst_23 = arith.constant dense<0.000000e+00> : vector<4x128xf32>
    %26 = tpu.matmul %25, %23, %cst_23 {dimension_numbers = #tpu.dot_dimension_numbers<[1], [0], [0], [1], [0, 0, 1, 1], [], []>} : vector<4x32xf32>, vector<32x128xf32>, vector<4x128xf32> -> vector<4x128xf32>
    %c1_24 = arith.constant 1 : index
    %c0_25 = arith.constant 0 : index
    %c0_26 = arith.constant 0 : index
    %27 = vector.load %arg5[%c1_24, %c0_25, %c0_26] : memref<2x4x1xf32, #tpu.memory_space<vmem>>, vector<1x4x1xf32>
    %28 = vector.shape_cast %27 : vector<1x4x1xf32> to vector<4x1xf32>
    %29 = vector.broadcast %28 : vector<4x1xf32> to vector<4x128xf32>
    %30 = arith.addf %26, %29 : vector<4x128xf32>
    %c0_27 = arith.constant 0 : index
    %c0_28 = arith.constant 0 : index
    %31 = vector.load %arg6[%c0_27, %c0_28] : memref<4x128xf32, #tpu.memory_space<vmem>>, vector<4x128xf32>
    tpu.vector_store %arg6[%c0_27, %c0_28], %30 {strides = array<i32>} : memref<4x128xf32, #tpu.memory_space<vmem>>, vector<4x128xf32>,
    return
  }
  func.func @transform_0(%arg0: i32) -> (i32, i32) {
    %c0_i32 = arith.constant 0 : i32
    %c0_i32_0 = arith.constant 0 : i32
    return %c0_i32, %arg0 : i32, i32
  }
  func.func @transform_1(%arg0: i32) -> (i32, i32, i32) {
    %c0_i32 = arith.constant 0 : i32
    %c0_i32_0 = arith.constant 0 : i32
    %c0_i32_1 = arith.constant 0 : i32
    %c0_i32_2 = arith.constant 0 : i32
    return %c0_i32, %c0_i32_0, %c0_i32_1 : i32, i32, i32
  }
  func.func @transform_2(%arg0: i32) -> (i32, i32, i32) {
    %c0_i32 = arith.constant 0 : i32
    %c0_i32_0 = arith.constant 0 : i32
    %c0_i32_1 = arith.constant 0 : i32
    %c0_i32_2 = arith.constant 0 : i32
    return %c0_i32, %c0_i32_0, %c0_i32_1 : i32, i32, i32
  }
  func.func @transform_3(%arg0: i32) -> (i32, i32, i32) {
    %c0_i32 = arith.constant 0 : i32
    %c0_i32_0 = arith.constant 0 : i32
    %c0_i32_1 = arith.constant 0 : i32
    %c0_i32_2 = arith.constant 0 : i32
    return %c0_i32, %c0_i32_0, %c0_i32_1 : i32, i32, i32
  }
  func.func @transform_4(%arg0: i32) -> (i32, i32, i32) {
    %c0_i32 = arith.constant 0 : i32
    %c0_i32_0 = arith.constant 0 : i32
    %c0_i32_1 = arith.constant 0 : i32
    %c0_i32_2 = arith.constant 0 : i32
    return %c0_i32, %c0_i32_0, %c0_i32_1 : i32, i32, i32
  }
  func.func @transform_5(%arg0: i32) -> (i32, i32) {
    %c0_i32 = arith.constant 0 : i32
    %c0_i32_0 = arith.constant 0 : i32
    return %c0_i32, %arg0 : i32, i32
  }
}

</mosaic_0001>

<llo_original>
// kernel: neural_ode_merge_forward.1
$region0: #{neural_ode_merge_forward.1}
  #allocation0 [shape = 'u32[]', space=smem, size = 0x4, offset = 0x4, fixed_abs, tag = 'smem constant byte address 0x4 - core index']
  #allocation1 [shape = 'u32[144,128]{1,0:T(1,128)}', space=vmem, size = 0x12000, scoped, tag = 'internal scratch']
  %s0 = inlined_call_operand.vmem [shape: f32[4,128], index: 0, kind: input, shape index: {}]
  %s1 = inlined_call_operand.vmem [shape: f32[2,32,4], index: 1, kind: input, shape index: {}]
  %s2 = inlined_call_operand.vmem [shape: f32[2,32,1], index: 2, kind: input, shape index: {}]
  %s3 = inlined_call_operand.vmem [shape: f32[2,4,32], index: 3, kind: input, shape index: {}]
  %s4 = inlined_call_operand.vmem [shape: f32[2,4,1], index: 4, kind: input, shape index: {}]
  %s5 = inlined_call_operand.vmem [shape: f32[4,128], index: 5, kind: output, shape index: {}]
  %s6 = sld [smem:[#allocation0]]
  $region30: #{neural_ode_merge_forward.1} parent=0
    _
  %s8 = ssub.s32 1, %s6
  %s9 = scalar_select 0, %s8, %s6
  // Predicated region
  $region2: #{neural_ode_merge_forward.1} parent=0 // pred_check
    _
  $region3: #{neural_ode_merge_forward.1} parent=0 // pred_check_branch
    %11 = sbr.rel (0) target = $region5
  $region4: #{neural_ode_merge_forward.1} parent=0 // pred_region
    _
  $region5: #{neural_ode_merge_forward.1} parent=0 // pred_fallthru
    _
  // Predicated region
  $region6: #{neural_ode_merge_forward.1} parent=0 // pred_check
    _
  $region7: #{neural_ode_merge_forward.1} parent=0 // pred_check_branch
    %13 = sbr.rel (0) target = $region9
  $region8: #{neural_ode_merge_forward.1} parent=0 // pred_region
    _
  $region9: #{neural_ode_merge_forward.1} parent=0 // pred_fallthru
    _
  // Predicated region
  $region10: #{neural_ode_merge_forward.1} parent=0 // pred_check
    _
  $region11: #{neural_ode_merge_forward.1} parent=0 // pred_check_branch
    %15 = sbr.rel (0) target = $region13
  $region12: #{neural_ode_merge_forward.1} parent=0 // pred_region
    _
  $region13: #{neural_ode_merge_forward.1} parent=0 // pred_fallthru
    _
  // Predicated region
  $region14: #{neural_ode_merge_forward.1} parent=0 // pred_check
    _
  $region15: #{neural_ode_merge_forward.1} parent=0 // pred_check_branch
    %17 = sbr.rel (0) target = $region17
  $region16: #{neural_ode_merge_forward.1} parent=0 // pred_region
    _
  $region17: #{neural_ode_merge_forward.1} parent=0 // pred_fallthru
    _
  // Predicated region
  $region18: #{neural_ode_merge_forward.1} parent=0 // pred_check
    _
  $region19: #{neural_ode_merge_forward.1} parent=0 // pred_check_branch
    %19 = sbr.rel (0) target = $region21
  $region20: #{neural_ode_merge_forward.1} parent=0 // pred_region
    _
  $region21: #{neural_ode_merge_forward.1} parent=0 // pred_fallthru
    _
  %v20 = vld [vmem:[%s0] sm:$0xf]
  %v21 = vld [vmem:[%s1] sm:$0xff]
  %v22 = vld [vmem:[%s1 + $0x8] sm:$0xff]
  %v23 = vld [vmem:[%s1 + $0x10] sm:$0xff]
  %v24 = vld [vmem:[%s1 + $0x18] sm:$0xff]
  %v25 = vld [vmem:[%s2] sm:$0xff]
  %v26 = vld [vmem:[%s2 + $0x8] sm:$0xff]
  %v27 = vld [vmem:[%s2 + $0x10] sm:$0xff]
  %v28 = vld [vmem:[%s2 + $0x18] sm:$0xff]
  %30 = vset.pattern.permute.xlu0 0
  %31 = vperm.xlu0 %30, %v25
  %v32 = vpop.permute.xlu0 %31
  %35 = vset.pattern.permute.xlu0 0
  %36 = vperm.xlu0 %35, %v26
  %v37 = vpop.permute.xlu0 %36
  %40 = vset.pattern.permute.xlu0 0
  %41 = vperm.xlu0 %40, %v27
  %v42 = vpop.permute.xlu0 %41
  %45 = vset.pattern.permute.xlu0 0
  %46 = vperm.xlu0 %45, %v28
  %v47 = vpop.permute.xlu0 %46
  %vm49 = vcmask 31744
  %v51 = vsel %vm49, %v21, 0
  %v54 = vsel %vm49, %v22, 0
  %v57 = vsel %vm49, %v23, 0
  %v60 = vsel %vm49, %v24, 0
  %vm62 = vcmask 1043456
  %v64 = vsel %vm62, %v20, 0
  %66 = vmatprep.subr.mxu0 0.0
  %67 = vmatpush1.msra.mxu0 %v64
  %68 = vmatprep.subr.mxu0 0.0
  %69 = vmatpush1.msra.mxu0 0.0
  %70 = vmatprep.subr.mxu0 0.0
  %71 = vmatpush1.msra.mxu0 0.0
  %72 = vmatprep.subr.mxu0 0.0
  %73 = vmatpush1.msra.mxu0 0.0
  %74 = vmatprep.subr.mxu0 0.0
  %75 = vmatpush1.msra.mxu0 0.0
  %76 = vmatprep.subr.mxu0 0.0
  %77 = vmatpush1.msra.mxu0 0.0
  %78 = vmatprep.subr.mxu0 0.0
  %79 = vmatpush1.msra.mxu0 0.0
  %80 = vmatprep.subr.mxu0 0.0
  %81 = vmatpush1.msra.mxu0 0.0
  %82 = vmatprep.subr.mxu0 0.0
  %83 = vmatpush1.msra.mxu0 0.0
  %84 = vmatprep.subr.mxu0 0.0
  %85 = vmatpush1.msra.mxu0 0.0
  %86 = vmatprep.subr.mxu0 0.0
  %87 = vmatpush1.msra.mxu0 0.0
  %88 = vmatprep.subr.mxu0 0.0
  %89 = vmatpush1.msra.mxu0 0.0
  %90 = vmatprep.subr.mxu0 0.0
  %91 = vmatpush1.msra.mxu0 0.0
  %92 = vmatprep.subr.mxu0 0.0
  %93 = vmatpush1.msra.mxu0 0.0
  %94 = vmatprep.subr.mxu0 0.0
  %95 = vmatpush1.msra.mxu0 0.0
  %96 = vmatprep.subr.mxu0 0.0
  %97 = vmatpush1.msra.mxu0 0.0
  %98 = vmatprep.subr.mxu0 0.0
  %99 = vmatpush1.msra.mxu0 0.0
  %100 = vmatprep.subr.mxu0 0.0
  %101 = vmatpush1.msra.mxu0 0.0
  %102 = vmatprep.subr.mxu0 0.0
  %103 = vmatpush1.msra.mxu0 0.0
  %104 = vmatprep.subr.mxu0 0.0
  %105 = vmatpush1.msra.mxu0 0.0
  %106 = vmatprep.subr.mxu0 0.0
  %107 = vmatpush1.msra.mxu0 0.0
  %108 = vmatprep.subr.mxu0 0.0
  %109 = vmatpush1.msra.mxu0 0.0
  %110 = vmatprep.subr.mxu0 0.0
  %111 = vmatpush1.msra.mxu0 0.0
  %112 = vmatprep.subr.mxu0 0.0
  %113 = vmatpush1.msra.mxu0 0.0
  %114 = vmatprep.subr.mxu0 0.0
  %115 = vmatpush1.msra.mxu0 0.0
  %116 = vmatprep.subr.mxu0 0.0
  %117 = vmatpush1.msra.mxu0 0.0
  %118 = vmatprep.subr.mxu0 0.0
  %119 = vmatpush1.msra.mxu0 0.0
  %120 = vmatprep.subr.mxu0 0.0
  %121 = vmatpush1.msra.mxu0 0.0
  %122 = vmatprep.subr.mxu0 0.0
  %123 = vmatpush1.msra.mxu0 0.0
  %124 = vmatprep.subr.mxu0 0.0
  %125 = vmatpush1.msra.mxu0 0.0
  %126 = vmatprep.subr.mxu0 0.0
  %127 = vmatpush1.msra.mxu0 0.0
  %128 = vmatprep.subr.mxu0 0.0
  %129 = vmatpush1.msra.mxu0 0.0
  %130 = vmatprep.mubr.f32.mxu0 0.0
  %131 = vmatmul.mubr.f32.gmra.mrb[0].mxu0 %v51
  %v132 = vpop.f32.mrb[0].mxu0
  %v133 = vadd.f32 %v32, %v132
  %v134 = vpop.f32.mrb[0].mxu0
  %135 = vmatprep.mubr.f32.mxu0 0.0
  %136 = vmatmul.mubr.f32.gmra.mrb[0].mxu0 %v54
  %v137 = vpop.f32.mrb[0].mxu0
  %v138 = vadd.f32 %v37, %v137
  %v139 = vpop.f32.mrb[0].mxu0
  %140 = vmatprep.mubr.f32.mxu0 0.0
  %141 = vmatmul.mubr.f32.gmra.mrb[0].mxu0 %v57
  %v142 = vpop.f32.mrb[0].mxu0
  %v143 = vadd.f32 %v42, %v142
  %v144 = vpop.f32.mrb[0].mxu0
  %145 = vmatprep.mubr.f32.mxu0 0.0
  %146 = vmatmul.mubr.f32.gmra.mrb[0].mxu0 %v60
  %v147 = vpop.f32.mrb[0].mxu0
  %v148 = vadd.f32 %v47, %v147
  %v149 = vpop.f32.mrb[0].mxu0
  %150 = vdwg.mxu0
  %v151 = vtanh.pop %v133
  %v152 = vtanh.pop %v138
  %v153 = vtanh.pop %v143
  %v154 = vtanh.pop %v148
  %v155 = vld [vmem:[%s3] sm:$0xf]
  %v156 = vld [vmem:[%s4] sm:$0xf]
  %158 = vset.pattern.permute.xlu0 0
  %159 = vperm.xlu0 %158, %v156
  %v160 = vpop.permute.xlu0 %159
  %vm162 = vcmask 261120
  %v164 = vsel %vm162, %v155, 0
  %166 = vmatprep.subr.mxu0 0.0
  %167 = vmatpush1.msra.mxu0 %v151
  %168 = vmatprep.subr.mxu0 0.0
  %169 = vmatpush1.msra.mxu0 %v152
  %170 = vmatprep.subr.mxu0 0.0
  %171 = vmatpush1.msra.mxu0 %v153
  %172 = vmatprep.subr.mxu0 0.0
  %173 = vmatpush1.msra.mxu0 %v154
  %174 = vmatprep.subr.mxu0 0.0
  %175 = vmatpush1.msra.mxu0 0.0
  %176 = vmatprep.subr.mxu0 0.0
  %177 = vmatpush1.msra.mxu0 0.0
  %178 = vmatprep.subr.mxu0 0.0
  %179 = vmatpush1.msra.mxu0 0.0
  %180 = vmatprep.subr.mxu0 0.0
  %181 = vmatpush1.msra.mxu0 0.0
  %182 = vmatprep.subr.mxu0 0.0
  %183 = vmatpush1.msra.mxu0 0.0
  %184 = vmatprep.subr.mxu0 0.0
  %185 = vmatpush1.msra.mxu0 0.0
  %186 = vmatprep.subr.mxu0 0.0
  %187 = vmatpush1.msra.mxu0 0.0
  %188 = vmatprep.subr.mxu0 0.0
  %189 = vmatpush1.msra.mxu0 0.0
  %190 = vmatprep.subr.mxu0 0.0
  %191 = vmatpush1.msra.mxu0 0.0
  %192 = vmatprep.subr.mxu0 0.0
  %193 = vmatpush1.msra.mxu0 0.0
  %194 = vmatprep.subr.mxu0 0.0
  %195 = vmatpush1.msra.mxu0 0.0
  %196 = vmatprep.subr.mxu0 0.0
  %197 = vmatpush1.msra.mxu0 0.0
  %198 = vmatprep.subr.mxu0 0.0
  %199 = vmatpush1.msra.mxu0 0.0
  %200 = vmatprep.subr.mxu0 0.0
  %201 = vmatpush1.msra.mxu0 0.0
  %202 = vmatprep.subr.mxu0 0.0
  %203 = vmatpush1.msra.mxu0 0.0
  %204 = vmatprep.subr.mxu0 0.0
  %205 = vmatpush1.msra.mxu0 0.0
  %206 = vmatprep.subr.mxu0 0.0
  %207 = vmatpush1.msra.mxu0 0.0
  %208 = vmatprep.subr.mxu0 0.0
  %209 = vmatpush1.msra.mxu0 0.0
  %210 = vmatprep.subr.mxu0 0.0
  %211 = vmatpush1.msra.mxu0 0.0
  %212 = vmatprep.subr.mxu0 0.0
  %213 = vmatpush1.msra.mxu0 0.0
  %214 = vmatprep.subr.mxu0 0.0
  %215 = vmatpush1.msra.mxu0 0.0
  %216 = vmatprep.subr.mxu0 0.0
  %217 = vmatpush1.msra.mxu0 0.0
  %218 = vmatprep.subr.mxu0 0.0
  %219 = vmatpush1.msra.mxu0 0.0
  %220 = vmatprep.subr.mxu0 0.0
  %221 = vmatpush1.msra.mxu0 0.0
  %222 = vmatprep.subr.mxu0 0.0
  %223 = vmatpush1.msra.mxu0 0.0
  %224 = vmatprep.subr.mxu0 0.0
  %225 = vmatpush1.msra.mxu0 0.0
  %226 = vmatprep.subr.mxu0 0.0
  %227 = vmatpush1.msra.mxu0 0.0
  %228 = vmatprep.subr.mxu0 0.0
  %229 = vmatpush1.msra.mxu0 0.0
  %230 = vmatprep.mubr.f32.mxu0 0.0
  %231 = vmatmul.mubr.f32.gmra.mrb[0].mxu0 %v164
  %v232 = vpop.f32.mrb[0].mxu0
  %v233 = vadd.f32 %v160, %v232
  %v234 = vpop.f32.mrb[0].mxu0
  %235 = vdwg.mxu0
  %s236 = scalar_lea.vmem %s1, 32
  %v237 = vld [vmem:[%s236] sm:$0xff]
  %v238 = vld [vmem:[%s236 + $0x8] sm:$0xff]
  %v239 = vld [vmem:[%s236 + $0x10] sm:$0xff]
  %v240 = vld [vmem:[%s236 + $0x18] sm:$0xff]
  %s241 = scalar_lea.vmem %s2, 32
  %v242 = vld [vmem:[%s241] sm:$0xff]
  %v243 = vld [vmem:[%s241 + $0x8] sm:$0xff]
  %v244 = vld [vmem:[%s241 + $0x10] sm:$0xff]
  %v245 = vld [vmem:[%s241 + $0x18] sm:$0xff]
  %247 = vset.pattern.permute.xlu0 0
  %248 = vperm.xlu0 %247, %v242
  %v249 = vpop.permute.xlu0 %248
  %252 = vset.pattern.permute.xlu0 0
  %253 = vperm.xlu0 %252, %v243
  %v254 = vpop.permute.xlu0 %253
  %257 = vset.pattern.permute.xlu0 0
  %258 = vperm.xlu0 %257, %v244
  %v259 = vpop.permute.xlu0 %258
  %262 = vset.pattern.permute.xlu0 0
  %263 = vperm.xlu0 %262, %v245
  %v264 = vpop.permute.xlu0 %263
  %v267 = vsel %vm49, %v237, 0
  %v270 = vsel %vm49, %v238, 0
  %v273 = vsel %vm49, %v239, 0
  %v276 = vsel %vm49, %v240, 0
  %v279 = vsel %vm62, %v233, 0
  %281 = vmatprep.subr.mxu0 0.0
  %282 = vmatpush1.msra.mxu0 %v279
  %283 = vmatprep.subr.mxu0 0.0
  %284 = vmatpush1.msra.mxu0 0.0
  %285 = vmatprep.subr.mxu0 0.0
  %286 = vmatpush1.msra.mxu0 0.0
  %287 = vmatprep.subr.mxu0 0.0
  %288 = vmatpush1.msra.mxu0 0.0
  %289 = vmatprep.subr.mxu0 0.0
  %290 = vmatpush1.msra.mxu0 0.0
  %291 = vmatprep.subr.mxu0 0.0
  %292 = vmatpush1.msra.mxu0 0.0
  %293 = vmatprep.subr.mxu0 0.0
  %294 = vmatpush1.msra.mxu0 0.0
  %295 = vmatprep.subr.mxu0 0.0
  %296 = vmatpush1.msra.mxu0 0.0
  %297 = vmatprep.subr.mxu0 0.0
  %298 = vmatpush1.msra.mxu0 0.0
  %299 = vmatprep.subr.mxu0 0.0
  %300 = vmatpush1.msra.mxu0 0.0
  %301 = vmatprep.subr.mxu0 0.0
  %302 = vmatpush1.msra.mxu0 0.0
  %303 = vmatprep.subr.mxu0 0.0
  %304 = vmatpush1.msra.mxu0 0.0
  %305 = vmatprep.subr.mxu0 0.0
  %306 = vmatpush1.msra.mxu0 0.0
  %307 = vmatprep.subr.mxu0 0.0
  %308 = vmatpush1.msra.mxu0 0.0
  %309 = vmatprep.subr.mxu0 0.0
  %310 = vmatpush1.msra.mxu0 0.0
  %311 = vmatprep.subr.mxu0 0.0
  %312 = vmatpush1.msra.mxu0 0.0
  %313 = vmatprep.subr.mxu0 0.0
  %314 = vmatpush1.msra.mxu0 0.0
  %315 = vmatprep.subr.mxu0 0.0
  %316 = vmatpush1.msra.mxu0 0.0
  %317 = vmatprep.subr.mxu0 0.0
  %318 = vmatpush1.msra.mxu0 0.0
  %319 = vmatprep.subr.mxu0 0.0
  %320 = vmatpush1.msra.mxu0 0.0
  %321 = vmatprep.subr.mxu0 0.0
  %322 = vmatpush1.msra.mxu0 0.0
  %323 = vmatprep.subr.mxu0 0.0
  %324 = vmatpush1.msra.mxu0 0.0
  %325 = vmatprep.subr.mxu0 0.0
  %326 = vmatpush1.msra.mxu0 0.0
  %327 = vmatprep.subr.mxu0 0.0
  %328 = vmatpush1.msra.mxu0 0.0
  %329 = vmatprep.subr.mxu0 0.0
  %330 = vmatpush1.msra.mxu0 0.0
  %331 = vmatprep.subr.mxu0 0.0
  %332 = vmatpush1.msra.mxu0 0.0
  %333 = vmatprep.subr.mxu0 0.0
  %334 = vmatpush1.msra.mxu0 0.0
  %335 = vmatprep.subr.mxu0 0.0
  %336 = vmatpush1.msra.mxu0 0.0
  %337 = vmatprep.subr.mxu0 0.0
  %338 = vmatpush1.msra.mxu0 0.0
  %339 = vmatprep.subr.mxu0 0.0
  %340 = vmatpush1.msra.mxu0 0.0
  %341 = vmatprep.subr.mxu0 0.0
  %342 = vmatpush1.msra.mxu0 0.0
  %343 = vmatprep.subr.mxu0 0.0
  %344 = vmatpush1.msra.mxu0 0.0
  %345 = vmatprep.mubr.f32.mxu0 0.0
  %346 = vmatmul.mubr.f32.gmra.mrb[0].mxu0 %v267
  %v347 = vpop.f32.mrb[0].mxu0
  %v348 = vadd.f32 %v249, %v347
  %v349 = vpop.f32.mrb[0].mxu0
  %350 = vmatprep.mubr.f32.mxu0 0.0
  %351 = vmatmul.mubr.f32.gmra.mrb[0].mxu0 %v270
  %v352 = vpop.f32.mrb[0].mxu0
  %v353 = vadd.f32 %v254, %v352
  %v354 = vpop.f32.mrb[0].mxu0
  %355 = vmatprep.mubr.f32.mxu0 0.0
  %356 = vmatmul.mubr.f32.gmra.mrb[0].mxu0 %v273
  %v357 = vpop.f32.mrb[0].mxu0
  %v358 = vadd.f32 %v259, %v357
  %v359 = vpop.f32.mrb[0].mxu0
  %360 = vmatprep.mubr.f32.mxu0 0.0
  %361 = vmatmul.mubr.f32.gmra.mrb[0].mxu0 %v276
  %v362 = vpop.f32.mrb[0].mxu0
  %v363 = vadd.f32 %v264, %v362
  %v364 = vpop.f32.mrb[0].mxu0
  %365 = vdwg.mxu0
  %v366 = vtanh.pop %v348
  %v367 = vtanh.pop %v353
  %v368 = vtanh.pop %v358
  %v369 = vtanh.pop %v363
  %s370 = scalar_lea.vmem %s3, 4
  %v371 = vld [vmem:[%s370] sm:$0xf]
  %s372 = scalar_lea.vmem %s4, 4
  %v373 = vld [vmem:[%s372] sm:$0xf]
  %375 = vset.pattern.permute.xlu0 0
  %376 = vperm.xlu0 %375, %v373
  %v377 = vpop.permute.xlu0 %376
  %v380 = vsel %vm162, %v371, 0
  %382 = vmatprep.subr.mxu0 0.0
  %383 = vmatpush1.msra.mxu0 %v366
  %384 = vmatprep.subr.mxu0 0.0
  %385 = vmatpush1.msra.mxu0 %v367
  %386 = vmatprep.subr.mxu0 0.0
  %387 = vmatpush1.msra.mxu0 %v368
  %388 = vmatprep.subr.mxu0 0.0
  %389 = vmatpush1.msra.mxu0 %v369
  %390 = vmatprep.subr.mxu0 0.0
  %391 = vmatpush1.msra.mxu0 0.0
  %392 = vmatprep.subr.mxu0 0.0
  %393 = vmatpush1.msra.mxu0 0.0
  %394 = vmatprep.subr.mxu0 0.0
  %395 = vmatpush1.msra.mxu0 0.0
  %396 = vmatprep.subr.mxu0 0.0
  %397 = vmatpush1.msra.mxu0 0.0
  %398 = vmatprep.subr.mxu0 0.0
  %399 = vmatpush1.msra.mxu0 0.0
  %400 = vmatprep.subr.mxu0 0.0
  %401 = vmatpush1.msra.mxu0 0.0
  %402 = vmatprep.subr.mxu0 0.0
  %403 = vmatpush1.msra.mxu0 0.0
  %404 = vmatprep.subr.mxu0 0.0
  %405 = vmatpush1.msra.mxu0 0.0
  %406 = vmatprep.subr.mxu0 0.0
  %407 = vmatpush1.msra.mxu0 0.0
  %408 = vmatprep.subr.mxu0 0.0
  %409 = vmatpush1.msra.mxu0 0.0
  %410 = vmatprep.subr.mxu0 0.0
  %411 = vmatpush1.msra.mxu0 0.0
  %412 = vmatprep.subr.mxu0 0.0
  %413 = vmatpush1.msra.mxu0 0.0
  %414 = vmatprep.subr.mxu0 0.0
  %415 = vmatpush1.msra.mxu0 0.0
  %416 = vmatprep.subr.mxu0 0.0
  %417 = vmatpush1.msra.mxu0 0.0
  %418 = vmatprep.subr.mxu0 0.0
  %419 = vmatpush1.msra.mxu0 0.0
  %420 = vmatprep.subr.mxu0 0.0
  %421 = vmatpush1.msra.mxu0 0.0
  %422 = vmatprep.subr.mxu0 0.0
  %423 = vmatpush1.msra.mxu0 0.0
  %424 = vmatprep.subr.mxu0 0.0
  %425 = vmatpush1.msra.mxu0 0.0
  %426 = vmatprep.subr.mxu0 0.0
  %427 = vmatpush1.msra.mxu0 0.0
  %428 = vmatprep.subr.mxu0 0.0
  %429 = vmatpush1.msra.mxu0 0.0
  %430 = vmatprep.subr.mxu0 0.0
  %431 = vmatpush1.msra.mxu0 0.0
  %432 = vmatprep.subr.mxu0 0.0
  %433 = vmatpush1.msra.mxu0 0.0
  %434 = vmatprep.subr.mxu0 0.0
  %435 = vmatpush1.msra.mxu0 0.0
  %436 = vmatprep.subr.mxu0 0.0
  %437 = vmatpush1.msra.mxu0 0.0
  %438 = vmatprep.subr.mxu0 0.0
  %439 = vmatpush1.msra.mxu0 0.0
  %440 = vmatprep.subr.mxu0 0.0
  %441 = vmatpush1.msra.mxu0 0.0
  %442 = vmatprep.subr.mxu0 0.0
  %443 = vmatpush1.msra.mxu0 0.0
  %444 = vmatprep.subr.mxu0 0.0
  %445 = vmatpush1.msra.mxu0 0.0
  %446 = vmatprep.mubr.f32.mxu0 0.0
  %447 = vmatmul.mubr.f32.gmra.mrb[0].mxu0 %v380
  %v448 = vpop.f32.mrb[0].mxu0
  %v449 = vadd.f32 %v377, %v448
  %v450 = vpop.f32.mrb[0].mxu0
  %451 = vdwg.mxu0
  %452 = vst [vmem:[%s5] sm:$0xf] %v449
  // Predicated region
  $region22: #{neural_ode_merge_forward.1} parent=0 // pred_check
    _
  $region23: #{neural_ode_merge_forward.1} parent=0 // pred_check_branch
    %454 = sbr.rel (0) target = $region25
  $region24: #{neural_ode_merge_forward.1} parent=0 // pred_region
    _
  $region25: #{neural_ode_merge_forward.1} parent=0 // pred_fallthru
    _
  // Predicated region
  $region26: #{neural_ode_merge_forward.1} parent=0 // pred_check
    _
  $region27: #{neural_ode_merge_forward.1} parent=0 // pred_check_branch
    %456 = sbr.rel (0) target = $region29
  $region28: #{neural_ode_merge_forward.1} parent=0 // pred_region
    _
  $region29: #{neural_ode_merge_forward.1} parent=0 // pred_fallthru
    _

</llo_original>
